<compile_context>
chip_gen: v6e
topology: v6e:2x2x1
jax: 0.10.0
libtpu: 0.0.40
codegen_flags: <defaults>
</compile_context>

<pallas_src>
import functools

import jax
import jax.numpy as jnp
from jax.experimental import pallas as pl
from jax.experimental.pallas import tpu as pltpu


def _actor_kernel(
    obs_ref, p1_ref, p2_ref, ph_ref, out_ref,
    *, obs_dim, h1_dim, h2_dim, k, act, log_std_min, log_std_max,
):
    x = obs_ref[...].astype(jnp.float32)

    # ---- head MLP: Linear -> ReLU -> Linear -> ReLU -------------------------
    # p1 = [w1 ; b1] with the bias as the last row (all row splits 8-aligned).
    h1 = jnp.dot(x, p1_ref[0:obs_dim, :], preferred_element_type=jnp.float32)
    h1 = jnp.maximum(h1 + p1_ref[obs_dim:obs_dim + 1, :], 0.0)

    h2 = jnp.dot(h1, p2_ref[0:h1_dim, :], preferred_element_type=jnp.float32)
    h2 = jnp.maximum(h2 + p2_ref[h1_dim:h1_dim + 1, :], 0.0)

    # ---- fused heads: one [H2, 128] matmul ----------------------------------
    # lanes [0:K) = pi logits, [K:K+KA) = mean, [K+KA:K+2KA) = log_std, rest pad.
    heads = jnp.dot(h2, ph_ref[0:h2_dim, :], preferred_element_type=jnp.float32)
    heads = heads + ph_ref[h2_dim:h2_dim + 1, :]

    ka = k * act
    lane = jax.lax.broadcasted_iota(jnp.int32, heads.shape, dimension=1)
    pi_mask = lane < k
    mean_mask = jnp.logical_and(lane >= k, lane < k + ka)
    std_mask = jnp.logical_and(lane >= k + ka, lane < k + 2 * ka)

    # Softmax restricted to the K valid pi lanes (pad lanes -> -inf -> exp == 0),
    # so the max / sum never see padded or non-pi lanes.
    neg_inf = jnp.float32(-jnp.inf)
    masked_logits = jnp.where(pi_mask, heads, neg_inf)
    m = jnp.max(masked_logits, axis=-1, keepdims=True)
    e = jnp.exp(masked_logits - m)
    denom = jnp.sum(e, axis=-1, keepdims=True)
    pi_vals = e * pl.reciprocal(denom, approx=True)

    # std = exp(clamp(log_std)); clamp bounds every lane so exp never overflows.
    std_vals = jnp.exp(jnp.clip(heads, log_std_min, log_std_max))

    out_ref[...] = jnp.where(
        pi_mask, pi_vals,
        jnp.where(mean_mask, heads,
                  jnp.where(std_mask, std_vals, 0.0)))


def pack_actor_params(params, *, lane_pad=128):
    """One-time packing of raw ([in,out]-transposed) Actor params into 3 buffers."""
    w1, b1, w2, b2, wpi, bpi, wmean, bmean, wlog, blog = params
    p1 = jnp.concatenate([w1, b1], axis=0)                    # [OBS+1, H1]
    p2 = jnp.concatenate([w2, b2], axis=0)                    # [H1+1, H2]
    wh = jnp.concatenate([wpi, wmean, wlog], axis=1)          # [H2, K+2*K*A]
    bh = jnp.concatenate([bpi, bmean, blog], axis=1)          # [1,  K+2*K*A]
    n_raw = wh.shape[1]
    n_out = max(lane_pad, ((n_raw + lane_pad - 1) // lane_pad) * lane_pad)
    wh = jnp.pad(wh, ((0, 0), (0, n_out - n_raw)))
    bh = jnp.pad(bh, ((0, 0), (0, n_out - n_raw)))
    ph = jnp.concatenate([wh, bh], axis=0)                    # [H2+1, n_out]
    return p1, p2, ph


def actor_forward(obs, packed_params, *, k, action_shape,
                  log_std_min, log_std_max, batch_tile=512):
    p1, p2, ph = packed_params
    B, obs_dim = obs.shape
    h1_dim = p1.shape[1]
    h2_dim = p2.shape[1]
    n_out = ph.shape[1]
    ka = k * action_shape

    # Batch tiling: full batch in one block when small, else an 8-aligned tile.
    tb = B if B <= batch_tile else (batch_tile // 8) * 8
    grid = (pl.cdiv(B, tb),)

    kernel = functools.partial(
        _actor_kernel,
        obs_dim=obs_dim, h1_dim=h1_dim, h2_dim=h2_dim,
        k=k, act=action_shape,
        log_std_min=float(log_std_min), log_std_max=float(log_std_max),
    )

    cost = pl.CostEstimate(
        flops=2 * B * (obs_dim * h1_dim + h1_dim * h2_dim + h2_dim * n_out),
        transcendentals=B * (k + 2 * ka),
        bytes_accessed=4 * (obs.size + p1.size + p2.size + ph.size + B * n_out),
    )

    out = pl.pallas_call(
        kernel,
        grid=grid,
        in_specs=[
            pl.BlockSpec((tb, obs_dim), lambda i: (i, 0)),   # streamed per batch tile
            pl.BlockSpec(p1.shape, lambda i: (0, 0)),        # weights stay VMEM-resident
            pl.BlockSpec(p2.shape, lambda i: (0, 0)),
            pl.BlockSpec(ph.shape, lambda i: (0, 0)),
        ],
        out_specs=pl.BlockSpec((tb, n_out), lambda i: (i, 0)),
        out_shape=jax.ShapeDtypeStruct((B, n_out), jnp.float32),
        compiler_params=pltpu.CompilerParams(dimension_semantics=("parallel",)),
        cost_estimate=cost,
    )(obs, p1, p2, ph)

    # split the lane-dense slab + reshape(-1, k, action_shape) as in PyTorch forward
    pi = out[:, :k]
    mean = out[:, k:k + ka].reshape(-1, k, action_shape)
    std = out[:, k + ka:k + 2 * ka].reshape(-1, k, action_shape)
    return pi, mean, std


def _actor_ref(obs, params, *, k, action_shape, log_std_min, log_std_max):
    """Plain-JAX reference of the PyTorch Actor.forward."""
    w1, b1, w2, b2, wpi, bpi, wmean, bmean, wlog, blog = params
    h1 = jnp.maximum(obs @ w1 + b1, 0.0)
    h2 = jnp.maximum(h1 @ w2 + b2, 0.0)
    pi = jax.nn.softmax(h2 @ wpi + bpi, axis=-1)
    mean = (h2 @ wmean + bmean).reshape(-1, k, action_shape)
    log_std = jnp.clip(h2 @ wlog + blog, log_std_min, log_std_max)
    log_std = log_std.reshape(-1, k, action_shape)   # FIX: reshape before exp (matches PyTorch)
    return pi, mean, jnp.exp(log_std)


def _init_linear(key, fan_in, fan_out):
    # Deterministic synthetic init (~ PyTorch uniform(-1/sqrt(fan_in), ...))
    kw, kb = jax.random.split(key)
    bound = 1.0 / jnp.sqrt(fan_in)
    w = jax.random.uniform(kw, (fan_in, fan_out), jnp.float32, -bound, bound)
    b = jax.random.uniform(kb, (1, fan_out), jnp.float32, -bound, bound)
    return w, b


if __name__ == "__main__":
    # Synthetic SAC Actor config:
    #   observation_size = 32, actor_head = [(64, relu), (64, relu)],
    #   continuous action_space with action_shape = 8, k = 4 mixture components,
    #   log_std_min = -20, log_std_max = 2.
    B, OBS, H1, H2, K, ACT = 8, 32, 64, 64, 4, 8
    LOG_STD_MIN, LOG_STD_MAX = -20.0, 2.0

    root = jax.random.PRNGKey(0)
    k_obs, k1, k2, kpi, kmean, klog = jax.random.split(root, 6)

    obs = jax.random.normal(k_obs, (B, OBS), jnp.float32)

    w1, b1 = _init_linear(k1, OBS, H1)
    w2, b2 = _init_linear(k2, H1, H2)
    wpi, bpi = _init_linear(kpi, H2, K)
    wmean, bmean = _init_linear(kmean, H2, K * ACT)
    wlog, blog = _init_linear(klog, H2, K * ACT)

    raw_params = (w1, b1, w2, b2, wpi, bpi, wmean, bmean, wlog, blog)
    packed = pack_actor_params(raw_params)   # packed once, reused per call

    pi, mean, std = actor_forward(
        obs, packed, k=K, action_shape=ACT,
        log_std_min=LOG_STD_MIN, log_std_max=LOG_STD_MAX,
    )
    jax.block_until_ready((pi, mean, std))

    # sanity + reference check
    pi_r, mean_r, std_r = _actor_ref(
        obs, raw_params, k=K, action_shape=ACT,
        log_std_min=LOG_STD_MIN, log_std_max=LOG_STD_MAX,
    )

    assert pi.shape == (B, K)
    assert mean.shape == (B, K, ACT)
    assert std.shape == (B, K, ACT)
    assert pi_r.shape == pi.shape and mean_r.shape == mean.shape and std_r.shape == std.shape
    assert bool(jnp.all(jnp.abs(jnp.sum(pi, axis=-1) - 1.0) < 5e-3))
    assert bool(jnp.all(std > 0.0))
    assert bool(jnp.allclose(pi, pi_r, atol=2e-2, rtol=2e-2))
    assert bool(jnp.allclose(mean, mean_r, atol=2e-2, rtol=2e-2))
    assert bool(jnp.allclose(std, std_r, atol=2e-2, rtol=2e-2))

    print("KERNEL_OK")
</pallas_src>

<mosaic_0001>
module attributes {stable_mosaic.version = 11 : i64} {
  func.func @_actor_kernel(%arg0: i32, %arg1: memref<8x32xf32, #tpu.memory_space<vmem>>, %arg2: memref<33x64xf32, #tpu.memory_space<vmem>>, %arg3: memref<65x64xf32, #tpu.memory_space<vmem>>, %arg4: memref<65x128xf32, #tpu.memory_space<vmem>>, %arg5: memref<8x128xf32, #tpu.memory_space<vmem>>) attributes {dimension_semantics = [#tpu.dimension_semantics<parallel>], iteration_bounds = array<i64: 1>, scalar_prefetch = 0 : i64, scratch_operands = 0 : i64, tpu.core_type = #tpu.core_type<tc>, window_params = [{transform_indices = @transform_0, window_bounds = array<i64: 8, 32>}, {pipeline_mode = #tpu.pipeline_mode<synchronous>, transform_indices = @transform_1, window_bounds = array<i64: 33, 64>}, {pipeline_mode = #tpu.pipeline_mode<synchronous>, transform_indices = @transform_2, window_bounds = array<i64: 65, 64>}, {pipeline_mode = #tpu.pipeline_mode<synchronous>, transform_indices = @transform_3, window_bounds = array<i64: 65, 128>}, {transform_indices = @transform_4, window_bounds = array<i64: 8, 128>}]} {
    %c0 = arith.constant 0 : index
    %c0_0 = arith.constant 0 : index
    %0 = vector.load %arg1[%c0, %c0_0] : memref<8x32xf32, #tpu.memory_space<vmem>>, vector<8x32xf32>
    %c0_1 = arith.constant 0 : index
    %c0_2 = arith.constant 0 : index
    %1 = vector.load %arg2[%c0_1, %c0_2] : memref<33x64xf32, #tpu.memory_space<vmem>>, vector<32x64xf32>
    %cst = arith.constant dense<0.000000e+00> : vector<8x64xf32>
    %2 = tpu.matmul %0, %1, %cst {dimension_numbers = #tpu.dot_dimension_numbers<[1], [0], [0], [1], [0, 0, 1, 1], [], []>} : vector<8x32xf32>, vector<32x64xf32>, vector<8x64xf32> -> vector<8x64xf32>
    %c32 = arith.constant 32 : index
    %c0_3 = arith.constant 0 : index
    %3 = vector.load %arg2[%c32, %c0_3] : memref<33x64xf32, #tpu.memory_space<vmem>>, vector<1x64xf32>
    %4 = vector.broadcast %3 : vector<1x64xf32> to vector<8x64xf32>
    %5 = arith.addf %2, %4 : vector<8x64xf32>
    %cst_4 = arith.constant 0.000000e+00 : f32
    %6 = vector.broadcast %cst_4 : f32 to vector<8x64xf32>
    %7 = arith.maximumf %5, %6 : vector<8x64xf32>
    %c0_5 = arith.constant 0 : index
    %c0_6 = arith.constant 0 : index
    %8 = vector.load %arg3[%c0_5, %c0_6] : memref<65x64xf32, #tpu.memory_space<vmem>>, vector<64x64xf32>
    %cst_7 = arith.constant dense<0.000000e+00> : vector<8x64xf32>
    %9 = tpu.matmul %7, %8, %cst_7 {dimension_numbers = #tpu.dot_dimension_numbers<[1], [0], [0], [1], [0, 0, 1, 1], [], []>} : vector<8x64xf32>, vector<64x64xf32>, vector<8x64xf32> -> vector<8x64xf32>
    %c64 = arith.constant 64 : index
    %c0_8 = arith.constant 0 : index
    %10 = vector.load %arg3[%c64, %c0_8] : memref<65x64xf32, #tpu.memory_space<vmem>>, vector<1x64xf32>
    %11 = vector.broadcast %10 : vector<1x64xf32> to vector<8x64xf32>
    %12 = arith.addf %9, %11 : vector<8x64xf32>
    %cst_9 = arith.constant 0.000000e+00 : f32
    %13 = vector.broadcast %cst_9 : f32 to vector<8x64xf32>
    %14 = arith.maximumf %12, %13 : vector<8x64xf32>
    %c0_10 = arith.constant 0 : index
    %c0_11 = arith.constant 0 : index
    %15 = vector.load %arg4[%c0_10, %c0_11] : memref<65x128xf32, #tpu.memory_space<vmem>>, vector<64x128xf32>
    %cst_12 = arith.constant dense<0.000000e+00> : vector<8x128xf32>
    %16 = tpu.matmul %14, %15, %cst_12 {dimension_numbers = #tpu.dot_dimension_numbers<[1], [0], [0], [1], [0, 0, 1, 1], [], []>} : vector<8x64xf32>, vector<64x128xf32>, vector<8x128xf32> -> vector<8x128xf32>
    %c64_13 = arith.constant 64 : index
    %c0_14 = arith.constant 0 : index
    %17 = vector.load %arg4[%c64_13, %c0_14] : memref<65x128xf32, #tpu.memory_space<vmem>>, vector<1x128xf32>
    %18 = vector.broadcast %17 : vector<1x128xf32> to vector<8x128xf32>
    %19 = arith.addf %16, %18 : vector<8x128xf32>
    %20 = tpu.iota {dimensions = array<i32: 1>} : vector<8x128xi32>
    %c4_i32 = arith.constant 4 : i32
    %21 = vector.broadcast %c4_i32 : i32 to vector<8x128xi32>
    %22 = arith.cmpi slt, %20, %21 : vector<8x128xi32>
    %c4_i32_15 = arith.constant 4 : i32
    %23 = vector.broadcast %c4_i32_15 : i32 to vector<8x128xi32>
    %24 = arith.cmpi sge, %20, %23 : vector<8x128xi32>
    %c36_i32 = arith.constant 36 : i32
    %25 = vector.broadcast %c36_i32 : i32 to vector<8x128xi32>
    %26 = arith.cmpi slt, %20, %25 : vector<8x128xi32>
    %27 = arith.andi %24, %26 : vector<8x128xi1>
    %c36_i32_16 = arith.constant 36 : i32
    %28 = vector.broadcast %c36_i32_16 : i32 to vector<8x128xi32>
    %29 = arith.cmpi sge, %20, %28 : vector<8x128xi32>
    %c68_i32 = arith.constant 68 : i32
    %30 = vector.broadcast %c68_i32 : i32 to vector<8x128xi32>
    %31 = arith.cmpi slt, %20, %30 : vector<8x128xi32>
    %32 = arith.andi %29, %31 : vector<8x128xi1>
    %cst_17 = arith.constant 0xFF800000 : f32
    %33 = vector.broadcast %cst_17 : f32 to vector<8x128xf32>
    %34 = arith.select %22, %19, %33 : vector<8x128xi1>, vector<8x128xf32>
    %cst_18 = arith.constant dense<0xFF800000> : vector<8xf32>
    %35 = vector.multi_reduction <maximumf>, %34, %cst_18 [1] : vector<8x128xf32> to vector<8xf32>
    %36 = vector.shape_cast %35 : vector<8xf32> to vector<8x1xf32>
    %37 = vector.broadcast %36 : vector<8x1xf32> to vector<8x128xf32>
    %38 = arith.subf %34, %37 : vector<8x128xf32>
    %39 = math.exp %38 : vector<8x128xf32>
    %cst_19 = arith.constant dense<0.000000e+00> : vector<8xf32>
    %40 = vector.multi_reduction <add>, %39, %cst_19 [1] : vector<8x128xf32> to vector<8xf32>
    %41 = vector.shape_cast %40 : vector<8xf32> to vector<8x1xf32>
    %42 = tpu.reciprocal %41 {approx = true} : vector<8x1xf32> -> vector<8x1xf32>
    %43 = vector.broadcast %42 : vector<8x1xf32> to vector<8x128xf32>
    %44 = arith.mulf %39, %43 : vector<8x128xf32>
    %cst_20 = arith.constant -2.000000e+01 : f32
    %cst_21 = arith.constant 2.000000e+00 : f32
    %45 = vector.broadcast %cst_20 : f32 to vector<8x128xf32>
    %46 = arith.maximumf %45, %19 : vector<8x128xf32>
    %47 = vector.broadcast %cst_21 : f32 to vector<8x128xf32>
    %48 = arith.minimumf %47, %46 : vector<8x128xf32>
    %49 = math.exp %48 : vector<8x128xf32>
    %cst_22 = arith.constant 0.000000e+00 : f32
    %50 = vector.broadcast %cst_22 : f32 to vector<8x128xf32>
    %51 = arith.select %32, %49, %50 : vector<8x128xi1>, vector<8x128xf32>
    %52 = arith.select %27, %19, %51 : vector<8x128xi1>, vector<8x128xf32>
    %53 = arith.select %22, %44, %52 : vector<8x128xi1>, vector<8x128xf32>
    %c0_23 = arith.constant 0 : index
    %c0_24 = arith.constant 0 : index
    %54 = vector.load %arg5[%c0_23, %c0_24] : memref<8x128xf32, #tpu.memory_space<vmem>>, vector<8x128xf32>
    tpu.vector_store %arg5[%c0_23, %c0_24], %53 {strides = array<i32>} : memref<8x128xf32, #tpu.memory_space<vmem>>, vector<8x128xf32>,
    return
  }
  func.func @transform_0(%arg0: i32) -> (i32, i32) {
    %c0_i32 = arith.constant 0 : i32
    %c0_i32_0 = arith.constant 0 : i32
    return %arg0, %c0_i32 : i32, i32
  }
  func.func @transform_1(%arg0: i32) -> (i32, i32) {
    %c0_i32 = arith.constant 0 : i32
    %c0_i32_0 = arith.constant 0 : i32
    %c0_i32_1 = arith.constant 0 : i32
    return %c0_i32, %c0_i32_0 : i32, i32
  }
  func.func @transform_2(%arg0: i32) -> (i32, i32) {
    %c0_i32 = arith.constant 0 : i32
    %c0_i32_0 = arith.constant 0 : i32
    %c0_i32_1 = arith.constant 0 : i32
    return %c0_i32, %c0_i32_0 : i32, i32
  }
  func.func @transform_3(%arg0: i32) -> (i32, i32) {
    %c0_i32 = arith.constant 0 : i32
    %c0_i32_0 = arith.constant 0 : i32
    %c0_i32_1 = arith.constant 0 : i32
    return %c0_i32, %c0_i32_0 : i32, i32
  }
  func.func @transform_4(%arg0: i32) -> (i32, i32) {
    %c0_i32 = arith.constant 0 : i32
    %c0_i32_0 = arith.constant 0 : i32
    return %arg0, %c0_i32 : i32, i32
  }
}

</mosaic_0001>

<llo_original>
// kernel: tpu_custom_call.1
$region0: #{tpu_custom_call.1}
  #allocation0 [shape = 'u32[]', space=smem, size = 0x4, offset = 0x4, fixed_abs, tag = 'smem constant byte address 0x4 - core index']
  #allocation1 [shape = 'u32[144,128]{1,0:T(1,128)}', space=vmem, size = 0x12000, scoped, tag = 'internal scratch']
  %s0 = inlined_call_operand.vmem [shape: f32[8,32], index: 0, kind: input, shape index: {}]
  %s1 = inlined_call_operand.vmem [shape: f32[33,64], index: 1, kind: input, shape index: {}]
  %s2 = inlined_call_operand.vmem [shape: f32[65,64], index: 2, kind: input, shape index: {}]
  %s3 = inlined_call_operand.vmem [shape: f32[65,128], index: 3, kind: input, shape index: {}]
  %s4 = inlined_call_operand.hbm [shape: f32[8,128], index: 4, kind: output, shape index: {}]
  %s5 = sld [smem:[#allocation0]]
  $region26: #{tpu_custom_call.1} parent=0
    _
  %s7 = ssub.s32 1, %s5
  %s8 = scalar_select 0, %s7, %s5
  $region1: #{tpu_custom_call.1} parent=0
    #allocation2 [shape = 'u8[4096]{0}', space=vmem, size = 0x1000, scoped, tag = 'output window, operand 0, single buffered']
    #allocation3 [shape = 's32[1]{0}', space=sflag, size = 0x4, scoped, tag = 'scoped memory for tpu_custom_call.1']
    %9 = vsyncpa [#allocation3], 0
    // Predicated region
    $region2: #{tpu_custom_call.1} parent=1 // pred_check
      _
    $region3: #{tpu_custom_call.1} parent=1 // pred_check_branch
      %11 = sbr.rel (0) target = $region5
    $region4: #{tpu_custom_call.1} parent=1 // pred_region
      _
    $region5: #{tpu_custom_call.1} parent=1 // pred_fallthru
      _
    // Predicated region
    $region6: #{tpu_custom_call.1} parent=1 // pred_check
      _
    $region7: #{tpu_custom_call.1} parent=1 // pred_check_branch
      %13 = sbr.rel (0) target = $region9
    $region8: #{tpu_custom_call.1} parent=1 // pred_region
      _
    $region9: #{tpu_custom_call.1} parent=1 // pred_fallthru
      _
    // Predicated region
    $region10: #{tpu_custom_call.1} parent=1 // pred_check
      _
    $region11: #{tpu_custom_call.1} parent=1 // pred_check_branch
      %15 = sbr.rel (0) target = $region13
    $region12: #{tpu_custom_call.1} parent=1 // pred_region
      _
    $region13: #{tpu_custom_call.1} parent=1 // pred_fallthru
      _
    // Predicated region
    $region14: #{tpu_custom_call.1} parent=1 // pred_check
      _
    $region15: #{tpu_custom_call.1} parent=1 // pred_check_branch
      %17 = sbr.rel (0) target = $region17
    $region16: #{tpu_custom_call.1} parent=1 // pred_region
      _
    $region17: #{tpu_custom_call.1} parent=1 // pred_fallthru
      _
    %v18 = vld [vmem:[%s0] sm:$0xff]
    %v19 = vld [vmem:[%s1] sm:$0xff]
    %v20 = vld [vmem:[%s1 + $0x8] sm:$0xff]
    %v21 = vld [vmem:[%s1 + $0x10] sm:$0xff]
    %v22 = vld [vmem:[%s1 + $0x18] sm:$0xff]
    %v23 = vld [vmem:[%s1 + $0x20] sm:$0x1]
    %v24 = vlaneseq
    %v25 = vshrl.u32 %v24, 7
    %v26 = vsub.s32 0, %v25
    %v27 = vrot.slane %v23, %v26
    %vm28 = vcmask 261120
    %v30 = vsel %vm28, %v18, 0
    %32 = vmatprep.subr.mxu0 0.0
    %33 = vmatpush1.msra.mxu0 0.0
    %34 = vmatprep.subr.mxu0 0.0
    %35 = vmatpush1.msra.mxu0 0.0
    %36 = vmatprep.subr.mxu0 0.0
    %37 = vmatpush1.msra.mxu0 0.0
    %38 = vmatprep.subr.mxu0 0.0
    %39 = vmatpush1.msra.mxu0 0.0
    %40 = vmatprep.subr.mxu0 0.0
    %41 = vmatpush1.msra.mxu0 0.0
    %42 = vmatprep.subr.mxu0 0.0
    %43 = vmatpush1.msra.mxu0 0.0
    %44 = vmatprep.subr.mxu0 0.0
    %45 = vmatpush1.msra.mxu0 0.0
    %46 = vmatprep.subr.mxu0 0.0
    %47 = vmatpush1.msra.mxu0 0.0
    %48 = vmatprep.subr.mxu0 0.0
    %49 = vmatpush1.msra.mxu0 0.0
    %50 = vmatprep.subr.mxu0 0.0
    %51 = vmatpush1.msra.mxu0 0.0
    %52 = vmatprep.subr.mxu0 0.0
    %53 = vmatpush1.msra.mxu0 0.0
    %54 = vmatprep.subr.mxu0 0.0
    %55 = vmatpush1.msra.mxu0 0.0
    %56 = vmatprep.subr.mxu0 0.0
    %57 = vmatpush1.msra.mxu0 %v22
    %58 = vmatprep.subr.mxu0 0.0
    %59 = vmatpush1.msra.mxu0 %v21
    %60 = vmatprep.subr.mxu0 0.0
    %61 = vmatpush1.msra.mxu0 %v20
    %62 = vmatprep.subr.mxu0 0.0
    %63 = vmatpush1.msra.mxu0 %v19
    %64 = vmatprep.subr.mxu0 0.0
    %65 = vmatpush2.msra.mxu0 0.0
    %66 = vmatprep.subr.mxu0 0.0
    %67 = vmatpush2.msra.mxu0 0.0
    %68 = vmatprep.subr.mxu0 0.0
    %69 = vmatpush2.msra.mxu0 0.0
    %70 = vmatprep.subr.mxu0 0.0
    %71 = vmatpush2.msra.mxu0 0.0
    %72 = vmatprep.subr.mxu0 0.0
    %73 = vmatpush2.msra.mxu0 0.0
    %74 = vmatprep.subr.mxu0 0.0
    %75 = vmatpush2.msra.mxu0 0.0
    %76 = vmatprep.subr.mxu0 0.0
    %77 = vmatpush2.msra.mxu0 0.0
    %78 = vmatprep.subr.mxu0 0.0
    %79 = vmatpush2.msra.mxu0 0.0
    %80 = vmatprep.subr.mxu0 0.0
    %81 = vmatpush2.msra.mxu0 0.0
    %82 = vmatprep.subr.mxu0 0.0
    %83 = vmatpush2.msra.mxu0 0.0
    %84 = vmatprep.subr.mxu0 0.0
    %85 = vmatpush2.msra.mxu0 0.0
    %86 = vmatprep.subr.mxu0 0.0
    %87 = vmatpush2.msra.mxu0 0.0
    %88 = vmatprep.subr.mxu0 0.0
    %89 = vmatpush2.msra.mxu0 0.0
    %90 = vmatprep.subr.mxu0 0.0
    %91 = vmatpush2.msra.mxu0 0.0
    %92 = vmatprep.subr.mxu0 0.0
    %93 = vmatpush2.msra.mxu0 0.0
    %94 = vmatprep.subr.mxu0 0.0
    %95 = vmatpush2.msra.mxu0 0.0
    %96 = vmatprep.mubr.f32.mxu0 0.0
    %97 = vmatmul.mubr.f32.gmra.mxu0 %v30
    %v98 = vpop.f32.mrf.mxu0
    %v99 = vadd.f32 %v27, %v98
    %v100 = vpop.f32.mrf.mxu0
    %101 = vdwg.mxu0
    %v102 = vmax.f32 %v99, 0.0
    %v103 = vld [vmem:[%s2] sm:$0xff]
    %v104 = vld [vmem:[%s2 + $0x8] sm:$0xff]
    %v105 = vld [vmem:[%s2 + $0x10] sm:$0xff]
    %v106 = vld [vmem:[%s2 + $0x18] sm:$0xff]
    %v107 = vld [vmem:[%s2 + $0x20] sm:$0xff]
    %v108 = vld [vmem:[%s2 + $0x28] sm:$0xff]
    %v109 = vld [vmem:[%s2 + $0x30] sm:$0xff]
    %v110 = vld [vmem:[%s2 + $0x38] sm:$0xff]
    %v111 = vld [vmem:[%s2 + $0x40] sm:$0x1]
    %v112 = vlaneseq
    %v113 = vshrl.u32 %v112, 7
    %v114 = vsub.s32 0, %v113
    %v115 = vrot.slane %v111, %v114
    %vm116 = vcmask 523264
    %v118 = vsel %vm116, %v102, 0
    %120 = vmatprep.subr.mxu0 0.0
    %121 = vmatpush1.msra.mxu0 0.0
    %122 = vmatprep.subr.mxu0 0.0
    %123 = vmatpush1.msra.mxu0 0.0
    %124 = vmatprep.subr.mxu0 0.0
    %125 = vmatpush1.msra.mxu0 0.0
    %126 = vmatprep.subr.mxu0 0.0
    %127 = vmatpush1.msra.mxu0 0.0
    %128 = vmatprep.subr.mxu0 0.0
    %129 = vmatpush1.msra.mxu0 0.0
    %130 = vmatprep.subr.mxu0 0.0
    %131 = vmatpush1.msra.mxu0 0.0
    %132 = vmatprep.subr.mxu0 0.0
    %133 = vmatpush1.msra.mxu0 0.0
    %134 = vmatprep.subr.mxu0 0.0
    %135 = vmatpush1.msra.mxu0 0.0
    %136 = vmatprep.subr.mxu0 0.0
    %137 = vmatpush1.msra.mxu0 %v110
    %138 = vmatprep.subr.mxu0 0.0
    %139 = vmatpush1.msra.mxu0 %v109
    %140 = vmatprep.subr.mxu0 0.0
    %141 = vmatpush1.msra.mxu0 %v108
    %142 = vmatprep.subr.mxu0 0.0
    %143 = vmatpush1.msra.mxu0 %v107
    %144 = vmatprep.subr.mxu0 0.0
    %145 = vmatpush1.msra.mxu0 %v106
    %146 = vmatprep.subr.mxu0 0.0
    %147 = vmatpush1.msra.mxu0 %v105
    %148 = vmatprep.subr.mxu0 0.0
    %149 = vmatpush1.msra.mxu0 %v104
    %150 = vmatprep.subr.mxu0 0.0
    %151 = vmatpush1.msra.mxu0 %v103
    %152 = vmatprep.subr.mxu0 0.0
    %153 = vmatpush2.msra.mxu0 0.0
    %154 = vmatprep.subr.mxu0 0.0
    %155 = vmatpush2.msra.mxu0 0.0
    %156 = vmatprep.subr.mxu0 0.0
    %157 = vmatpush2.msra.mxu0 0.0
    %158 = vmatprep.subr.mxu0 0.0
    %159 = vmatpush2.msra.mxu0 0.0
    %160 = vmatprep.subr.mxu0 0.0
    %161 = vmatpush2.msra.mxu0 0.0
    %162 = vmatprep.subr.mxu0 0.0
    %163 = vmatpush2.msra.mxu0 0.0
    %164 = vmatprep.subr.mxu0 0.0
    %165 = vmatpush2.msra.mxu0 0.0
    %166 = vmatprep.subr.mxu0 0.0
    %167 = vmatpush2.msra.mxu0 0.0
    %168 = vmatprep.subr.mxu0 0.0
    %169 = vmatpush2.msra.mxu0 0.0
    %170 = vmatprep.subr.mxu0 0.0
    %171 = vmatpush2.msra.mxu0 0.0
    %172 = vmatprep.subr.mxu0 0.0
    %173 = vmatpush2.msra.mxu0 0.0
    %174 = vmatprep.subr.mxu0 0.0
    %175 = vmatpush2.msra.mxu0 0.0
    %176 = vmatprep.subr.mxu0 0.0
    %177 = vmatpush2.msra.mxu0 0.0
    %178 = vmatprep.subr.mxu0 0.0
    %179 = vmatpush2.msra.mxu0 0.0
    %180 = vmatprep.subr.mxu0 0.0
    %181 = vmatpush2.msra.mxu0 0.0
    %182 = vmatprep.subr.mxu0 0.0
    %183 = vmatpush2.msra.mxu0 0.0
    %184 = vmatprep.mubr.f32.mxu0 0.0
    %185 = vmatmul.mubr.f32.gmra.mxu0 %v118
    %v186 = vpop.f32.mrf.mxu0
    %v187 = vadd.f32 %v115, %v186
    %v188 = vpop.f32.mrf.mxu0
    %189 = vdwg.mxu0
    %v190 = vmax.f32 %v187, 0.0
    %v191 = vld [vmem:[%s3] sm:$0xff]
    %v192 = vld [vmem:[%s3 + $0x8] sm:$0xff]
    %v193 = vld [vmem:[%s3 + $0x10] sm:$0xff]
    %v194 = vld [vmem:[%s3 + $0x18] sm:$0xff]
    %v195 = vld [vmem:[%s3 + $0x20] sm:$0xff]
    %v196 = vld [vmem:[%s3 + $0x28] sm:$0xff]
    %v197 = vld [vmem:[%s3 + $0x30] sm:$0xff]
    %v198 = vld [vmem:[%s3 + $0x38] sm:$0xff]
    %v199 = vld [vmem:[%s3 + $0x40] sm:$0x1]
    %v200 = vlaneseq
    %v201 = vshrl.u32 %v200, 7
    %v202 = vsub.s32 0, %v201
    %v203 = vrot.slane %v199, %v202
    %v205 = vsel %vm116, %v190, 0
    %207 = vmatprep.subr.mxu0 0.0
    %208 = vmatpush1.msra.mxu0 0.0
    %209 = vmatprep.subr.mxu0 0.0
    %210 = vmatpush1.msra.mxu0 0.0
    %211 = vmatprep.subr.mxu0 0.0
    %212 = vmatpush1.msra.mxu0 0.0
    %213 = vmatprep.subr.mxu0 0.0
    %214 = vmatpush1.msra.mxu0 0.0
    %215 = vmatprep.subr.mxu0 0.0
    %216 = vmatpush1.msra.mxu0 0.0
    %217 = vmatprep.subr.mxu0 0.0
    %218 = vmatpush1.msra.mxu0 0.0
    %219 = vmatprep.subr.mxu0 0.0
    %220 = vmatpush1.msra.mxu0 0.0
    %221 = vmatprep.subr.mxu0 0.0
    %222 = vmatpush1.msra.mxu0 0.0
    %223 = vmatprep.subr.mxu0 0.0
    %224 = vmatpush1.msra.mxu0 %v198
    %225 = vmatprep.subr.mxu0 0.0
    %226 = vmatpush1.msra.mxu0 %v197
    %227 = vmatprep.subr.mxu0 0.0
    %228 = vmatpush1.msra.mxu0 %v196
    %229 = vmatprep.subr.mxu0 0.0
    %230 = vmatpush1.msra.mxu0 %v195
    %231 = vmatprep.subr.mxu0 0.0
    %232 = vmatpush1.msra.mxu0 %v194
    %233 = vmatprep.subr.mxu0 0.0
    %234 = vmatpush1.msra.mxu0 %v193
    %235 = vmatprep.subr.mxu0 0.0
    %236 = vmatpush1.msra.mxu0 %v192
    %237 = vmatprep.subr.mxu0 0.0
    %238 = vmatpush1.msra.mxu0 %v191
    %239 = vmatprep.subr.mxu0 0.0
    %240 = vmatpush2.msra.mxu0 0.0
    %241 = vmatprep.subr.mxu0 0.0
    %242 = vmatpush2.msra.mxu0 0.0
    %243 = vmatprep.subr.mxu0 0.0
    %244 = vmatpush2.msra.mxu0 0.0
    %245 = vmatprep.subr.mxu0 0.0
    %246 = vmatpush2.msra.mxu0 0.0
    %247 = vmatprep.subr.mxu0 0.0
    %248 = vmatpush2.msra.mxu0 0.0
    %249 = vmatprep.subr.mxu0 0.0
    %250 = vmatpush2.msra.mxu0 0.0
    %251 = vmatprep.subr.mxu0 0.0
    %252 = vmatpush2.msra.mxu0 0.0
    %253 = vmatprep.subr.mxu0 0.0
    %254 = vmatpush2.msra.mxu0 0.0
    %255 = vmatprep.subr.mxu0 0.0
    %256 = vmatpush2.msra.mxu0 0.0
    %257 = vmatprep.subr.mxu0 0.0
    %258 = vmatpush2.msra.mxu0 0.0
    %259 = vmatprep.subr.mxu0 0.0
    %260 = vmatpush2.msra.mxu0 0.0
    %261 = vmatprep.subr.mxu0 0.0
    %262 = vmatpush2.msra.mxu0 0.0
    %263 = vmatprep.subr.mxu0 0.0
    %264 = vmatpush2.msra.mxu0 0.0
    %265 = vmatprep.subr.mxu0 0.0
    %266 = vmatpush2.msra.mxu0 0.0
    %267 = vmatprep.subr.mxu0 0.0
    %268 = vmatpush2.msra.mxu0 0.0
    %269 = vmatprep.subr.mxu0 0.0
    %270 = vmatpush2.msra.mxu0 0.0
    %271 = vmatprep.mubr.f32.mxu0 0.0
    %272 = vmatmul.mubr.f32.gmra.mxu0 %v205
    %v273 = vpop.f32.mrf.mxu0
    %v274 = vadd.f32 %v203, %v273
    %v275 = vpop.f32.mrf.mxu0
    %276 = vdwg.mxu0
    %v277 = vlaneseq
    %v278 = vand.u32 %v277, 127
    %vm279 = vcmp.lt.s32.totalorder %v278, 4
    %vm280 = vcmp.ge.s32.totalorder %v278, 4
    %vm281 = vcmp.lt.s32.totalorder %v278, 36
    %vm282 = vmand %vm280, %vm281
    %vm283 = vcmp.ge.s32.totalorder %v278, 36
    %vm284 = vcmp.lt.s32.totalorder %v278, 68
    %vm285 = vmand %vm283, %vm284
    %v286 = vsel %vm279, %v274, -inf
    %287 = vmax.xlane.f32.xlu0 %v286
    %v288 = vpop.xlane.xlu0 %287
    %v289 = vsub.f32 %v286, %v288
    %v290 = vmul.f32 %v289, 1.442695
    %v291 = vpow.pop %v290
    %292 = vadd.xlane.f32.xlu0 %v291
    %v293 = vpop.xlane.xlu0 %292
    %v294 = vrcp.pop %v293
    %v295 = vmul.f32 %v291, %v294
    %v296 = vmax.f32 %v274, -20.0
    %v297 = vmin.f32 %v296, 2.0
    %v298 = vmul.f32 %v297, 1.442695
    %v299 = vpow.pop %v298
    %v300 = vsel %vm285, %v299, 0.0
    %v301 = vsel %vm282, %v274, %v300
    %v302 = vsel %vm279, %v295, %v301
    %303 = vst [vmem:[#allocation2] sm:$0xff] %v302
    // Predicated region
    $region18: #{tpu_custom_call.1} parent=1 // pred_check
      _
    $region19: #{tpu_custom_call.1} parent=1 // pred_check_branch
      %305 = sbr.rel (0) target = $region21
    $region20: #{tpu_custom_call.1} parent=1 // pred_region
      %s307 = ssub.s32 128, 128
      %308 = vsyncadd [#allocation3], %s307
      %s310 = sshll.u32 [#allocation2], 4
      %s311 = int_to_ptr.vmem [resolvable:$true] %s310
      %313 = dma.vmem_to_hbm [thread:$0]  %s311, 128, %s4, [#allocation3]
    $region21: #{tpu_custom_call.1} parent=1 // pred_fallthru
      _
    // Predicated region
    $region22: #{tpu_custom_call.1} parent=1 // pred_check
      _
    $region23: #{tpu_custom_call.1} parent=1 // pred_check_branch
      %315 = sbr.rel (0) target = $region25
    $region24: #{tpu_custom_call.1} parent=1 // pred_region
      %316 = dma.done [#allocation3], 128
    $region25: #{tpu_custom_call.1} parent=1 // pred_fallthru
      _
    %317 = vsyncpa [#allocation3], 1

</llo_original>
